<compile_context>
chip_gen: v7x
topology: tpu7x:2x2x1
jax: 0.10.0
libtpu: 0.0.40
codegen_flags: <defaults>
</compile_context>

<pallas_src>
import functools

import numpy as np
import jax
import jax.numpy as jnp
from jax import lax
from jax.experimental import pallas as pl
from jax.experimental.pallas import tpu as pltpu

# ---- problem sizes (small, consistent with the module) ----
B = 2
C_IN = 4
H = 16
W = 16
C_FEAT = 32
NUM_CLASSES = 8
K = 3                        # conv kernel size, padding = 1 -> "same"
N = B * H * W                # 512 : lane dim of the conv intermediate
K_IM2COL = K * K * C_IN      # 36
K_AUG = K_IM2COL + 1         # +1 ones row folds the conv bias -> 37
K_PAD = 40                   # pad contraction (sublane) dim to a multiple of 8
OUT_ROWS = C_FEAT + NUM_CLASSES  # 40 : packed [feat ; logits] rows

# Global-average-pool as a GEMM: block-diagonal [N, B] with 1/(H*W) weights.
# Built with numpy so it is a trace-time constant under jit (no runtime kron).
_POOL_T = (np.kron(np.eye(B, dtype=np.float32),
                   np.ones((H * W, 1), dtype=np.float32)) / float(H * W))


def transfer_kernel(patches_ref, wenc_ref, pool_ref, wcls_ref, bcls_ref, out_ref):
    # patches_ref : [K_PAD, N]            transposed im2col (+ ones row, zero padded)
    # wenc_ref    : [C_FEAT, K_PAD]       conv weight with bias column folded in
    # pool_ref    : [N, B]                block-diagonal mean-pool matrix
    # wcls_ref    : [NUM_CLASSES, C_FEAT] classifier weight (transposed)
    # bcls_ref    : [NUM_CLASSES, 1]      classifier bias (column)
    # out_ref     : [OUT_ROWS, B]         packed [feat_t ; logits_t]
    conv_t = jnp.dot(wenc_ref[...], patches_ref[...],
                     preferred_element_type=jnp.float32)           # [C_FEAT, N]
    relu_t = jnp.maximum(conv_t, 0.0)                               # lane-dense f32 ReLU
    feat_t = jnp.dot(relu_t, pool_ref[...],
                     preferred_element_type=jnp.float32)            # [C_FEAT, B]
    logits_t = jnp.dot(wcls_ref[...], feat_t,
                       preferred_element_type=jnp.float32) + bcls_ref[...]  # [NC, B]
    out_ref[...] = jnp.concatenate([feat_t, logits_t], axis=0)      # [OUT_ROWS, B]


@functools.partial(jax.jit, static_argnames=("return_feat",))
def transfer_model(x_nchw, wconv, bconv, wcls, bcls, return_feat=False):
    """x_nchw: [B, C_IN, H, W] float32 (PyTorch layout)."""
    # NCHW -> NHWC, zero-pad spatial (padding=1).
    x_nhwc = jnp.transpose(x_nchw, (0, 2, 3, 1)).astype(jnp.float32)
    xp = jnp.pad(x_nhwc, ((0, 0), (1, 1), (1, 1), (0, 0)))           # [B, H+2, W+2, C_IN]

    # im2col (transposed, lane-dense): row ordering (kh, kw, c_in) matches
    # wconv.reshape(K*K*C_IN, C_FEAT); column ordering (b, h, w) matches _POOL_T.
    taps = [xp[:, kh:kh + H, kw:kw + W, :] for kh in range(K) for kw in range(K)]
    patches = jnp.concatenate(taps, axis=-1)                         # [B, H, W, 36]
    patches_t = patches.transpose(3, 0, 1, 2).reshape(K_IM2COL, N)   # [36, N]
    ones_row = jnp.ones((1, N), dtype=jnp.float32)                   # folds conv bias
    patches_t = jnp.concatenate([patches_t, ones_row], axis=0)       # [37, N]
    patches_t = jnp.pad(patches_t, ((0, K_PAD - K_AUG), (0, 0)))     # [40, N]

    w_flat = wconv.reshape(K_IM2COL, C_FEAT)                          # [36, C_FEAT]
    w_enc = jnp.concatenate([w_flat, bconv.reshape(1, C_FEAT)], axis=0)  # [37, C_FEAT]
    w_enc_t = jnp.pad(w_enc, ((0, K_PAD - K_AUG), (0, 0))).T          # [C_FEAT, 40]

    wcls_t = wcls.T                                                   # [NUM_CLASSES, C_FEAT]
    bcls_c = bcls.reshape(NUM_CLASSES, 1)                             # [NUM_CLASSES, 1]

    flops = (2 * C_FEAT * K_PAD * N) + (2 * C_FEAT * N * B) + (2 * NUM_CLASSES * C_FEAT * B)
    bytes_accessed = 4 * (K_PAD * N + C_FEAT * K_PAD + N * B
                          + NUM_CLASSES * C_FEAT + NUM_CLASSES + OUT_ROWS * B)

    vmem_spec = pl.BlockSpec(memory_space=pltpu.MemorySpace.VMEM)
    out_t = pl.pallas_call(
        transfer_kernel,
        out_shape=jax.ShapeDtypeStruct((OUT_ROWS, B), jnp.float32),
        in_specs=[vmem_spec] * 5,
        out_specs=vmem_spec,
        cost_estimate=pl.CostEstimate(flops=flops, transcendentals=0,
                                      bytes_accessed=bytes_accessed),
        compiler_params=pltpu.CompilerParams(allow_input_fusion=[True] * 5),
    )(patches_t, w_enc_t, _POOL_T, wcls_t, bcls_c)

    packed = out_t.T                                                  # [B, OUT_ROWS]
    logits = packed[:, C_FEAT:]
    if return_feat:
        return packed[:, :C_FEAT], logits
    return logits


def reference_model(x_nchw, wconv, bconv, wcls, bcls):
    """Pure-JAX reference for correctness checking (NCHW conv like PyTorch)."""
    w_oihw = jnp.transpose(wconv, (3, 2, 0, 1))
    y = lax.conv_general_dilated(
        x_nchw, w_oihw, window_strides=(1, 1), padding=((1, 1), (1, 1)),
        dimension_numbers=("NCHW", "OIHW", "NCHW"))
    y = y + bconv.reshape(1, C_FEAT, 1, 1)
    y = jnp.maximum(y, 0.0)
    feat = jnp.mean(y, axis=(2, 3))                    # global avg pool -> [B, C_FEAT]
    out = feat @ wcls + bcls.reshape(1, NUM_CLASSES)
    return feat, out


if __name__ == "__main__":
    key = jax.random.PRNGKey(0)
    k_x, k_wc, k_bc, k_wl, k_bl = jax.random.split(key, 5)

    x = jax.random.normal(k_x, (B, C_IN, H, W), dtype=jnp.float32)
    wconv = jax.random.normal(k_wc, (K, K, C_IN, C_FEAT), dtype=jnp.float32) * 0.1
    bconv = jax.random.normal(k_bc, (C_FEAT,), dtype=jnp.float32) * 0.1
    wcls = jax.random.normal(k_wl, (C_FEAT, NUM_CLASSES), dtype=jnp.float32) * 0.1
    bcls = jax.random.normal(k_bl, (NUM_CLASSES,), dtype=jnp.float32) * 0.1

    # return_feat=True path.
    feat, out = transfer_model(x, wconv, bconv, wcls, bcls, return_feat=True)
    feat = jax.block_until_ready(feat)
    out = jax.block_until_ready(out)

    # return_feat=False (default) path.
    out_only = jax.block_until_ready(transfer_model(x, wconv, bconv, wcls, bcls))

    feat_ref, out_ref = reference_model(x, wconv, bconv, wcls, bcls)
    assert feat.shape == (B, C_FEAT) and out.shape == (B, NUM_CLASSES)
    assert out_only.shape == (B, NUM_CLASSES)
    assert jnp.allclose(feat, feat_ref, atol=1e-4, rtol=1e-4)
    assert jnp.allclose(out, out_ref, atol=1e-4, rtol=1e-4)
    assert jnp.allclose(out_only, out_ref, atol=1e-4, rtol=1e-4)

    print("KERNEL_OK")
</pallas_src>

<mosaic_0001>
module attributes {stable_mosaic.version = 11 : i64} {
  func.func @transfer_kernel(%arg0: memref<40x512xf32, #tpu.memory_space<vmem>>, %arg1: memref<32x40xf32, #tpu.memory_space<vmem>>, %arg2: memref<512x2xf32, #tpu.memory_space<vmem>>, %arg3: memref<8x32xf32, #tpu.memory_space<vmem>>, %arg4: memref<8x1xf32, #tpu.memory_space<vmem>>, %arg5: memref<40x2xf32, #tpu.memory_space<vmem>>) attributes {dimension_semantics = [], scalar_prefetch = 0 : i64, scratch_operands = 0 : i64, tpu.core_type = #tpu.core_type<tc>} {
    %c0 = arith.constant 0 : index
    %c0_0 = arith.constant 0 : index
    %0 = vector.load %arg1[%c0, %c0_0] : memref<32x40xf32, #tpu.memory_space<vmem>>, vector<32x40xf32>
    %c0_1 = arith.constant 0 : index
    %c0_2 = arith.constant 0 : index
    %1 = vector.load %arg0[%c0_1, %c0_2] : memref<40x512xf32, #tpu.memory_space<vmem>>, vector<40x512xf32>
    %cst = arith.constant dense<0.000000e+00> : vector<32x512xf32>
    %2 = tpu.matmul %0, %1, %cst {dimension_numbers = #tpu.dot_dimension_numbers<[1], [0], [0], [1], [0, 0, 1, 1], [], []>} : vector<32x40xf32>, vector<40x512xf32>, vector<32x512xf32> -> vector<32x512xf32>
    %cst_3 = arith.constant 0.000000e+00 : f32
    %3 = vector.broadcast %cst_3 : f32 to vector<32x512xf32>
    %4 = arith.maximumf %2, %3 : vector<32x512xf32>
    %c0_4 = arith.constant 0 : index
    %c0_5 = arith.constant 0 : index
    %5 = vector.load %arg2[%c0_4, %c0_5] : memref<512x2xf32, #tpu.memory_space<vmem>>, vector<512x2xf32>
    %cst_6 = arith.constant dense<0.000000e+00> : vector<32x2xf32>
    %6 = tpu.matmul %4, %5, %cst_6 {dimension_numbers = #tpu.dot_dimension_numbers<[1], [0], [0], [1], [0, 0, 1, 1], [], []>} : vector<32x512xf32>, vector<512x2xf32>, vector<32x2xf32> -> vector<32x2xf32>
    %c0_7 = arith.constant 0 : index
    %c0_8 = arith.constant 0 : index
    %7 = vector.load %arg3[%c0_7, %c0_8] : memref<8x32xf32, #tpu.memory_space<vmem>>, vector<8x32xf32>
    %cst_9 = arith.constant dense<0.000000e+00> : vector<8x2xf32>
    %8 = tpu.matmul %7, %6, %cst_9 {dimension_numbers = #tpu.dot_dimension_numbers<[1], [0], [0], [1], [0, 0, 1, 1], [], []>} : vector<8x32xf32>, vector<32x2xf32>, vector<8x2xf32> -> vector<8x2xf32>
    %c0_10 = arith.constant 0 : index
    %c0_11 = arith.constant 0 : index
    %9 = vector.load %arg4[%c0_10, %c0_11] : memref<8x1xf32, #tpu.memory_space<vmem>>, vector<8x1xf32>
    %10 = vector.broadcast %9 : vector<8x1xf32> to vector<8x2xf32>
    %11 = arith.addf %8, %10 : vector<8x2xf32>
    %12 = tpu.concatenate %6, %11 in 0 : vector<32x2xf32>, vector<8x2xf32> -> vector<40x2xf32>
    %c0_12 = arith.constant 0 : index
    %c0_13 = arith.constant 0 : index
    %13 = vector.load %arg5[%c0_12, %c0_13] : memref<40x2xf32, #tpu.memory_space<vmem>>, vector<40x2xf32>
    tpu.vector_store %arg5[%c0_12, %c0_13], %12 {strides = array<i32>} : memref<40x2xf32, #tpu.memory_space<vmem>>, vector<40x2xf32>,
    return
  }
}

</mosaic_0001>

<llo_original>
// kernel: transfer_model.2
$region0: #{transfer_model.2}
  #allocation0 [shape = 'u32[]', space=smem, size = 0x4, offset = 0x4, fixed_abs, tag = 'smem constant byte address 0x4 - core index']
  #allocation1 [shape = 'u32[144,128]{1,0:T(1,128)}', space=vmem, size = 0x12000, scoped, tag = 'internal scratch']
  #allocation2 [shape = 'u32[2048]{0}', space=vmem, size = 0x2000, scoped, tag = 'scoped memory for transfer_model.2']
  #allocation3 [shape = 'u32[2048]{0}', space=vmem, size = 0x2000, scoped, tag = 'scoped memory for transfer_model.2']
  #allocation4 [shape = 'u32[2048]{0}', space=vmem, size = 0x2000, scoped, tag = 'scoped memory for transfer_model.2']
  #allocation5 [shape = 'u32[2048]{0}', space=vmem, size = 0x2000, scoped, tag = 'scoped memory for transfer_model.2']
  #allocation6 [shape = 'u32[2048]{0}', space=vmem, size = 0x2000, scoped, tag = 'scoped memory for transfer_model.2']
  #allocation7 [shape = 'u32[2048]{0}', space=vmem, size = 0x2000, scoped, tag = 'scoped memory for transfer_model.2']
  #allocation8 [shape = 'u32[2048]{0}', space=vmem, size = 0x2000, scoped, tag = 'scoped memory for transfer_model.2']
  #allocation9 [shape = 'u32[2048]{0}', space=vmem, size = 0x2000, scoped, tag = 'scoped memory for transfer_model.2']
  #allocation10 [shape = 'u32[2048]{0}', space=vmem, size = 0x2000, scoped, tag = 'scoped memory for transfer_model.2']
  #allocation11 [shape = 'u32[2048]{0}', space=vmem, size = 0x2000, scoped, tag = 'scoped memory for transfer_model.2']
  #allocation12 [shape = 'u32[2048]{0}', space=vmem, size = 0x2000, scoped, tag = 'scoped memory for transfer_model.2']
  #allocation13 [shape = 'u32[2048]{0}', space=vmem, size = 0x2000, scoped, tag = 'scoped memory for transfer_model.2']
  #allocation14 [shape = 'u32[2048]{0}', space=vmem, size = 0x2000, scoped, tag = 'scoped memory for transfer_model.2']
  #allocation15 [shape = 'u32[2048]{0}', space=vmem, size = 0x2000, scoped, tag = 'scoped memory for transfer_model.2']
  #allocation16 [shape = 'u32[2048]{0}', space=vmem, size = 0x2000, scoped, tag = 'scoped memory for transfer_model.2']
  %s0 = inlined_call_operand.vmem [shape: f32[512,2], index: 0, kind: input, shape index: {}]
  %s1 = inlined_call_operand.vmem [shape: f32[8,1], index: 1, kind: input, shape index: {}]
  %s2 = inlined_call_operand.vmem [shape: f32[36,512], index: 2, kind: input, shape index: {}]
  %s3 = inlined_call_operand.<no memory space> [shape: f32[], index: 3, kind: input, shape index: {}]
  %s4 = inlined_call_operand.<no memory space> [shape: f32[], index: 4, kind: input, shape index: {}]
  %s5 = inlined_call_operand.<no memory space> [shape: s32[], index: 5, kind: input, shape index: {}]
  %s6 = inlined_call_operand.vmem [shape: f32[1,32], index: 6, kind: input, shape index: {}]
  %s7 = inlined_call_operand.<no memory space> [shape: f32[], index: 7, kind: input, shape index: {}]
  %s8 = inlined_call_operand.vmem [shape: f32[36,32], index: 8, kind: input, shape index: {}]
  %s9 = inlined_call_operand.vmem [shape: f32[32,8], index: 9, kind: input, shape index: {}]
  %s10 = inlined_call_operand.vmem [shape: f32[40,2], index: 10, kind: output, shape index: {}]
  %s11 = sld [smem:[#allocation0]]
  $region34: #{transfer_model.2} parent=0
    _
  %s13 = ssub.s32 1, %s11
  %s14 = scalar_select 0, %s13, %s11
  %v15 = vstv %s3
  %v16 = vstv %s4
  %v17 = vstv %s5
  %v18 = vstv %s7
  %v19 = vstv %s7
  %v20 = vstv %s4
  %v21 = vstv %s5
  $region1: #{transfer_model.2} parent=0
    #allocation17 [shape = 'u8[81920]{0}', space=vmem, size = 0x14000, dematerialized = true, scoped, tag = 'FusionAdapter Buffer %fusion.1 = f32[40,512]{1,0:T(8,128)} fusion(%param_2.18, %param_3.17, %param_4.13, %param_5.6), kind=kLoop, calls=%fused_computation.9.clone, metadata={op_name="jit(transfer_model)/jit(_pad)/pad" stack_frame_id=14}']
    #allocation18 [shape = 'u8[16384]{0}', space=vmem, size = 0x4000, dematerialized = true, scoped, tag = 'FusionAdapter Buffer %fusion.6 = f32[32,40]{1,0:T(8,128)} fusion(%param_6.6, %param_7.8, %param_8.4, %param_4.13, %param_5.6), kind=kLoop, calls=%fused_computation.15.clone.clone, metadata={op_name="jit(transfer_model)/transpose" stack_frame_id=19}']
    #allocation19 [shape = 'u8[4096]{0}', space=vmem, size = 0x1000, dematerialized = true, scoped, tag = 'FusionAdapter Buffer %fusion.12 = f32[8,32]{1,0:T(8,128)} fusion(%param_9.5), kind=kLoop, calls=%fused_computation.22.clone, metadata={op_name="jit(transfer_model)/transpose" stack_frame_id=20}']
    // Predicated region
    $region2: #{transfer_model.2} parent=1 // pred_check
      _
    $region3: #{transfer_model.2} parent=1 // pred_check_branch
      %23 = sbr.rel (0) target = $region5
    $region4: #{transfer_model.2} parent=1 // pred_region
      _
    $region5: #{transfer_model.2} parent=1 // pred_fallthru
      _
    // Predicated region
    $region6: #{transfer_model.2} parent=1 // pred_check
      _
    $region7: #{transfer_model.2} parent=1 // pred_check_branch
      %25 = sbr.rel (0) target = $region9
    $region8: #{transfer_model.2} parent=1 // pred_region
      %s27 = ssub.s32 1, 0
      %s28 = smul.u32 512, %s27
      %p29 = scmp.lt.s32.totalorder 0, 0
      %s30 = scalar_select %p29, 0, 0
      %s31 = smul.addr %s30, 8
      %s32 = scalar_lea.vmem %s6, %s31
      %s34 = ssub.s32 1, 0
      %s35 = smul.u32 512, %s34
    $region9: #{transfer_model.2} parent=1 // pred_fallthru
      _
    // Predicated region
    $region10: #{transfer_model.2} parent=1 // pred_check
      _
    $region11: #{transfer_model.2} parent=1 // pred_check_branch
      %37 = sbr.rel (0) target = $region13
    $region12: #{transfer_model.2} parent=1 // pred_region
      _
    $region13: #{transfer_model.2} parent=1 // pred_fallthru
      _
    // Predicated region
    $region14: #{transfer_model.2} parent=1 // pred_check
      _
    $region15: #{transfer_model.2} parent=1 // pred_check_branch
      %39 = sbr.rel (0) target = $region17
    $region16: #{transfer_model.2} parent=1 // pred_region
      _
    $region17: #{transfer_model.2} parent=1 // pred_fallthru
      _
    // Predicated region
    $region18: #{transfer_model.2} parent=1 // pred_check
      _
    $region19: #{transfer_model.2} parent=1 // pred_check_branch
      %41 = sbr.rel (0) target = $region21
    $region20: #{transfer_model.2} parent=1 // pred_region
      _
    $region21: #{transfer_model.2} parent=1 // pred_fallthru
      _
    // Predicated region
    $region22: #{transfer_model.2} parent=1 // pred_check
      _
    $region23: #{transfer_model.2} parent=1 // pred_check_branch
      %43 = sbr.rel (0) target = $region25
    $region24: #{transfer_model.2} parent=1 // pred_region
      _
    $region25: #{transfer_model.2} parent=1 // pred_fallthru
      _
    %s45 = ssub.s32 1, 0
    %s46 = smul.u32 512, %s45
    %p47 = scmp.lt.s32.totalorder 0, 0
    %s48 = scalar_select %p47, 0, 0
    %s49 = smul.addr %s48, 8
    %s50 = scalar_lea.vmem %s6, %s49
    %s52 = ssub.s32 1, 0
    %s53 = smul.u32 512, %s52
    %p54 = scmp.lt.s32.totalorder 0, 0
    %s55 = scalar_select %p54, 0, 0
    %s56 = smul.addr %s55, 8
    %s57 = scalar_lea.vmem %s6, %s56
    %s59 = ssub.s32 1, 0
    %s60 = smul.u32 512, %s59
    %v61 = vld [vmem:[%s2] sm:$0xff]
    %v62 = vlaneseq
    %v63 = vshrl.u32 %v62, 7
    %vm65 = vcmp.lt.s32.totalorder %v63, 36
    %v66 = vsel %vm65, %v61, %v15
    %v67 = vlaneseq
    %v68 = vshrl.u32 %v67, 7
    %71 = xla_tuple %v68, %v17
    %72 = xla_tuple %71
    %vm73 = vcmp.lt.s32.totalorder %v68, %v17
    %v74 = vsel %vm73, 1, 0
    %75 = xla_tuple %v74
    %76 = xla_tuple %v74, %v66, %v16
    %77 = xla_tuple %76
    %v78 = vsel %vm73, %v66, %v16
    %79 = xla_tuple %v78
    %81 = vst [vmem:[#allocation17] sm:$0xff] %v78
    %s82 = scalar_lea.vmem %s2, 8
    %v83 = vld [vmem:[%s82] sm:$0xff]
    %v84 = vlaneseq
    %v85 = vshrl.u32 %v84, 7
    %vm87 = vcmp.lt.s32.totalorder %v85, 36
    %v88 = vsel %vm87, %v83, %v15
    %v89 = vlaneseq
    %v90 = vshrl.u32 %v89, 7
    %93 = xla_tuple %v90, %v17
    %94 = xla_tuple %93
    %vm95 = vcmp.lt.s32.totalorder %v90, %v17
    %v96 = vsel %vm95, 1, 0
    %97 = xla_tuple %v96
    %98 = xla_tuple %v96, %v88, %v16
    %99 = xla_tuple %98
    %v100 = vsel %vm95, %v88, %v16
    %101 = xla_tuple %v100
    %s102 = scalar_lea.vmem [#allocation17], 8
    %104 = vst [vmem:[%s102] sm:$0xff] %v100
    %s105 = scalar_lea.vmem %s2, 16
    %v106 = vld [vmem:[%s105] sm:$0xff]
    %v107 = vlaneseq
    %v108 = vshrl.u32 %v107, 7
    %vm110 = vcmp.lt.s32.totalorder %v108, 36
    %v111 = vsel %vm110, %v106, %v15
    %v112 = vlaneseq
    %v113 = vshrl.u32 %v112, 7
    %116 = xla_tuple %v113, %v17
    %117 = xla_tuple %116
    %vm118 = vcmp.lt.s32.totalorder %v113, %v17
    %v119 = vsel %vm118, 1, 0
    %120 = xla_tuple %v119
    %121 = xla_tuple %v119, %v111, %v16
    %122 = xla_tuple %121
    %v123 = vsel %vm118, %v111, %v16
    %124 = xla_tuple %v123
    %s125 = scalar_lea.vmem [#allocation17], 16
    %127 = vst [vmem:[%s125] sm:$0xff] %v123
    %s128 = scalar_lea.vmem %s2, 24
    %v129 = vld [vmem:[%s128] sm:$0xff]
    %v130 = vlaneseq
    %v131 = vshrl.u32 %v130, 7
    %vm133 = vcmp.lt.s32.totalorder %v131, 36
    %v134 = vsel %vm133, %v129, %v15
    %v135 = vlaneseq
    %v136 = vshrl.u32 %v135, 7
    %139 = xla_tuple %v136, %v17
    %140 = xla_tuple %139
    %vm141 = vcmp.lt.s32.totalorder %v136, %v17
    %v142 = vsel %vm141, 1, 0
    %143 = xla_tuple %v142
    %144 = xla_tuple %v142, %v134, %v16
    %145 = xla_tuple %144
    %v146 = vsel %vm141, %v134, %v16
    %147 = xla_tuple %v146
    %s148 = scalar_lea.vmem [#allocation17], 24
    %150 = vst [vmem:[%s148] sm:$0xff] %v146
    %s151 = scalar_lea.vmem %s2, 32
    %v152 = vld [vmem:[%s151] sm:$0xff]
    %v153 = vlaneseq
    %v154 = vshrl.u32 %v153, 7
    %v155 = vadd.s32 %v154, 8
    %vm156 = vcmp.lt.s32.totalorder %v155, 36
    %v157 = vsel %vm156, %v152, %v15
    %v158 = vlaneseq
    %v159 = vshrl.u32 %v158, 7
    %v161 = vadd.s32 %v159, 8
    %162 = xla_tuple %v161, %v17
    %163 = xla_tuple %162
    %vm164 = vcmp.lt.s32.totalorder %v161, %v17
    %v165 = vsel %vm164, 1, 0
    %166 = xla_tuple %v165
    %167 = xla_tuple %v165, %v157, %v16
    %168 = xla_tuple %167
    %v169 = vsel %vm164, %v157, %v16
    %170 = xla_tuple %v169
    %s171 = scalar_lea.vmem [#allocation17], 32
    %173 = vst [vmem:[%s171] sm:$0xff] %v169
    %s174 = scalar_lea.vmem %s2, 40
    %v175 = vld [vmem:[%s174] sm:$0xff]
    %v176 = vlaneseq
    %v177 = vshrl.u32 %v176, 7
    %v178 = vadd.s32 %v177, 8
    %vm179 = vcmp.lt.s32.totalorder %v178, 36
    %v180 = vsel %vm179, %v175, %v15
    %v181 = vlaneseq
    %v182 = vshrl.u32 %v181, 7
    %v184 = vadd.s32 %v182, 8
    %185 = xla_tuple %v184, %v17
    %186 = xla_tuple %185
    %vm187 = vcmp.lt.s32.totalorder %v184, %v17
    %v188 = vsel %vm187, 1, 0
    %189 = xla_tuple %v188
    %190 = xla_tuple %v188, %v180, %v16
    %191 = xla_tuple %190
    %v192 = vsel %vm187, %v180, %v16
    %193 = xla_tuple %v192
    %s194 = scalar_lea.vmem [#allocation17], 40
    %196 = vst [vmem:[%s194] sm:$0xff] %v192
    %s197 = scalar_lea.vmem %s2, 48
    %v198 = vld [vmem:[%s197] sm:$0xff]
    %v199 = vlaneseq
    %v200 = vshrl.u32 %v199, 7
    %v201 = vadd.s32 %v200, 8
    %vm202 = vcmp.lt.s32.totalorder %v201, 36
    %v203 = vsel %vm202, %v198, %v15
    %v204 = vlaneseq
    %v205 = vshrl.u32 %v204, 7
    %v207 = vadd.s32 %v205, 8
    %208 = xla_tuple %v207, %v17
    %209 = xla_tuple %208
    %vm210 = vcmp.lt.s32.totalorder %v207, %v17
    %v211 = vsel %vm210, 1, 0
    %212 = xla_tuple %v211
    %213 = xla_tuple %v211, %v203, %v16
    %214 = xla_tuple %213
    %v215 = vsel %vm210, %v203, %v16
    %216 = xla_tuple %v215
    %s217 = scalar_lea.vmem [#allocation17], 48
    %219 = vst [vmem:[%s217] sm:$0xff] %v215
    %s220 = scalar_lea.vmem %s2, 56
    %v221 = vld [vmem:[%s220] sm:$0xff]
    %v222 = vlaneseq
    %v223 = vshrl.u32 %v222, 7
    %v224 = vadd.s32 %v223, 8
    %vm225 = vcmp.lt.s32.totalorder %v224, 36
    %v226 = vsel %vm225, %v221, %v15
    %v227 = vlaneseq
    %v228 = vshrl.u32 %v227, 7
    %v230 = vadd.s32 %v228, 8
    %231 = xla_tuple %v230, %v17
    %232 = xla_tuple %231
    %vm233 = vcmp.lt.s32.totalorder %v230, %v17
    %v234 = vsel %vm233, 1, 0
    %235 = xla_tuple %v234
    %236 = xla_tuple %v234, %v226, %v16
    %237 = xla_tuple %236
    %v238 = vsel %vm233, %v226, %v16
    %239 = xla_tuple %v238
    %s240 = scalar_lea.vmem [#allocation17], 56
    %242 = vst [vmem:[%s240] sm:$0xff] %v238
    %s243 = scalar_lea.vmem %s2, 64
    %v244 = vld [vmem:[%s243] sm:$0xff]
    %v245 = vlaneseq
    %v246 = vshrl.u32 %v245, 7
    %v247 = vadd.s32 %v246, 16
    %vm248 = vcmp.lt.s32.totalorder %v247, 36
    %v249 = vsel %vm248, %v244, %v15
    %v250 = vlaneseq
    %v251 = vshrl.u32 %v250, 7
    %v253 = vadd.s32 %v251, 16
    %254 = xla_tuple %v253, %v17
    %255 = xla_tuple %254
    %vm256 = vcmp.lt.s32.totalorder %v253, %v17
    %v257 = vsel %vm256, 1, 0
    %258 = xla_tuple %v257
    %259 = xla_tuple %v257, %v249, %v16
    %260 = xla_tuple %259
    %v261 = vsel %vm256, %v249, %v16
    %262 = xla_tuple %v261
    %s263 = scalar_lea.vmem [#allocation17], 64
    %265 = vst [vmem:[%s263] sm:$0xff] %v261
    %s266 = scalar_lea.vmem %s2, 72
    %v267 = vld [vmem:[%s266] sm:$0xff]
    %v268 = vlaneseq
    %v269 = vshrl.u32 %v268, 7
    %v270 = vadd.s32 %v269, 16
    %vm271 = vcmp.lt.s32.totalorder %v270, 36
    %v272 = vsel %vm271, %v267, %v15
    %v273 = vlaneseq
    %v274 = vshrl.u32 %v273, 7
    %v276 = vadd.s32 %v274, 16
    %277 = xla_tuple %v276, %v17
    %278 = xla_tuple %277
    %vm279 = vcmp.lt.s32.totalorder %v276, %v17
    %v280 = vsel %vm279, 1, 0
    %281 = xla_tuple %v280
    %282 = xla_tuple %v280, %v272, %v16
    %283 = xla_tuple %282
    %v284 = vsel %vm279, %v272, %v16
    %285 = xla_tuple %v284
    %s286 = scalar_lea.vmem [#allocation17], 72
    %288 = vst [vmem:[%s286] sm:$0xff] %v284
    %s289 = scalar_lea.vmem %s2, 80
    %v290 = vld [vmem:[%s289] sm:$0xff]
    %v291 = vlaneseq
    %v292 = vshrl.u32 %v291, 7
    %v293 = vadd.s32 %v292, 16
    %vm294 = vcmp.lt.s32.totalorder %v293, 36
    %v295 = vsel %vm294, %v290, %v15
    %v296 = vlaneseq
    %v297 = vshrl.u32 %v296, 7
    %v299 = vadd.s32 %v297, 16
    %300 = xla_tuple %v299, %v17
    %301 = xla_tuple %300
    %vm302 = vcmp.lt.s32.totalorder %v299, %v17
    %v303 = vsel %vm302, 1, 0
    %304 = xla_tuple %v303
    %305 = xla_tuple %v303, %v295, %v16
    %306 = xla_tuple %305
    %v307 = vsel %vm302, %v295, %v16
    %308 = xla_tuple %v307
    %s309 = scalar_lea.vmem [#allocation17], 80
    %311 = vst [vmem:[%s309] sm:$0xff] %v307
    %s312 = scalar_lea.vmem %s2, 88
    %v313 = vld [vmem:[%s312] sm:$0xff]
    %v314 = vlaneseq
    %v315 = vshrl.u32 %v314, 7
    %v316 = vadd.s32 %v315, 16
    %vm317 = vcmp.lt.s32.totalorder %v316, 36
    %v318 = vsel %vm317, %v313, %v15
    %v319 = vlaneseq
    %v320 = vshrl.u32 %v319, 7
    %v322 = vadd.s32 %v320, 16
    %323 = xla_tuple %v322, %v17
    %324 = xla_tuple %323
    %vm325 = vcmp.lt.s32.totalorder %v322, %v17
    %v326 = vsel %vm325, 1, 0
    %327 = xla_tuple %v326
    %328 = xla_tuple %v326, %v318, %v16
    %329 = xla_tuple %328
    %v330 = vsel %vm325, %v318, %v16
    %331 = xla_tuple %v330
    %s332 = scalar_lea.vmem [#allocation17], 88
    %334 = vst [vmem:[%s332] sm:$0xff] %v330
    %s335 = scalar_lea.vmem %s2, 96
    %v336 = vld [vmem:[%s335] sm:$0xff]
    %v337 = vlaneseq
    %v338 = vshrl.u32 %v337, 7
    %v339 = vadd.s32 %v338, 24
    %vm340 = vcmp.lt.s32.totalorder %v339, 36
    %v341 = vsel %vm340, %v336, %v15
    %v342 = vlaneseq
    %v343 = vshrl.u32 %v342, 7
    %v345 = vadd.s32 %v343, 24
    %346 = xla_tuple %v345, %v17
    %347 = xla_tuple %346
    %vm348 = vcmp.lt.s32.totalorder %v345, %v17
    %v349 = vsel %vm348, 1, 0
    %350 = xla_tuple %v349
    %351 = xla_tuple %v349, %v341, %v16
    %352 = xla_tuple %351
    %v353 = vsel %vm348, %v341, %v16
    %354 = xla_tuple %v353
    %s355 = scalar_lea.vmem [#allocation17], 96
    %357 = vst [vmem:[%s355] sm:$0xff] %v353
    %s358 = scalar_lea.vmem %s2, 104
    %v359 = vld [vmem:[%s358] sm:$0xff]
    %v360 = vlaneseq
    %v361 = vshrl.u32 %v360, 7
    %v362 = vadd.s32 %v361, 24
    %vm363 = vcmp.lt.s32.totalorder %v362, 36
    %v364 = vsel %vm363, %v359, %v15
    %v365 = vlaneseq
    %v366 = vshrl.u32 %v365, 7
    %v368 = vadd.s32 %v366, 24
    %369 = xla_tuple %v368, %v17
    %370 = xla_tuple %369
    %vm371 = vcmp.lt.s32.totalorder %v368, %v17
    %v372 = vsel %vm371, 1, 0
    %373 = xla_tuple %v372
    %374 = xla_tuple %v372, %v364, %v16
    %375 = xla_tuple %374
    %v376 = vsel %vm371, %v364, %v16
    %377 = xla_tuple %v376
    %s378 = scalar_lea.vmem [#allocation17], 104
    %380 = vst [vmem:[%s378] sm:$0xff] %v376
    %s381 = scalar_lea.vmem %s2, 112
    %v382 = vld [vmem:[%s381] sm:$0xff]
    %v383 = vlaneseq
    %v384 = vshrl.u32 %v383, 7
    %v385 = vadd.s32 %v384, 24
    %vm386 = vcmp.lt.s32.totalorder %v385, 36
    %v387 = vsel %vm386, %v382, %v15
    %v388 = vlaneseq
    %v389 = vshrl.u32 %v388, 7
    %v391 = vadd.s32 %v389, 24
    %392 = xla_tuple %v391, %v17
    %393 = xla_tuple %392
    %vm394 = vcmp.lt.s32.totalorder %v391, %v17
    %v395 = vsel %vm394, 1, 0
    %396 = xla_tuple %v395
    %397 = xla_tuple %v395, %v387, %v16
    %398 = xla_tuple %397
    %v399 = vsel %vm394, %v387, %v16
    %400 = xla_tuple %v399
    %s401 = scalar_lea.vmem [#allocation17], 112
    %403 = vst [vmem:[%s401] sm:$0xff] %v399
    %s404 = scalar_lea.vmem %s2, 120
    %v405 = vld [vmem:[%s404] sm:$0xff]
    %v406 = vlaneseq
    %v407 = vshrl.u32 %v406, 7
    %v408 = vadd.s32 %v407, 24
    %vm409 = vcmp.lt.s32.totalorder %v408, 36
    %v410 = vsel %vm409, %v405, %v15
    %v411 = vlaneseq
    %v412 = vshrl.u32 %v411, 7
    %v414 = vadd.s32 %v412, 24
    %415 = xla_tuple %v414, %v17
    %416 = xla_tuple %415
    %vm417 = vcmp.lt.s32.totalorder %v414, %v17
    %v418 = vsel %vm417, 1, 0
    %419 = xla_tuple %v418
    %420 = xla_tuple %v418, %v410, %v16
    %421 = xla_tuple %420
    %v422 = vsel %vm417, %v410, %v16
    %423 = xla_tuple %v422
    %s424 = scalar_lea.vmem [#allocation17], 120
    %426 = vst [vmem:[%s424] sm:$0xff] %v422
    %s427 = scalar_lea.vmem %s2, 128
    %v428 = vld [vmem:[%s427] sm:$0xff]
    %v429 = vlaneseq
    %v430 = vshrl.u32 %v429, 7
    %v431 = vadd.s32 %v430, 32
    %vm432 = vcmp.lt.s32.totalorder %v431, 36
    %v433 = vsel %vm432, %v428, %v15
    %v434 = vlaneseq
    %v435 = vshrl.u32 %v434, 7
    %v437 = vadd.s32 %v435, 32
    %438 = xla_tuple %v437, %v17
    %439 = xla_tuple %438
    %vm440 = vcmp.lt.s32.totalorder %v437, %v17
    %v441 = vsel %vm440, 1, 0
    %442 = xla_tuple %v441
    %443 = xla_tuple %v441, %v433, %v16
    %444 = xla_tuple %443
    %v445 = vsel %vm440, %v433, %v16
    %446 = xla_tuple %v445
    %s447 = scalar_lea.vmem [#allocation17], 128
    %449 = vst [vmem:[%s447] sm:$0xff] %v445
    %s450 = scalar_lea.vmem %s2, 136
    %v451 = vld [vmem:[%s450] sm:$0xff]
    %v452 = vlaneseq
    %v453 = vshrl.u32 %v452, 7
    %v454 = vadd.s32 %v453, 32
    %vm455 = vcmp.lt.s32.totalorder %v454, 36
    %v456 = vsel %vm455, %v451, %v15
    %v457 = vlaneseq
    %v458 = vshrl.u32 %v457, 7
    %v460 = vadd.s32 %v458, 32
    %461 = xla_tuple %v460, %v17
    %462 = xla_tuple %461
    %vm463 = vcmp.lt.s32.totalorder %v460, %v17
    %v464 = vsel %vm463, 1, 0
    %465 = xla_tuple %v464
    %466 = xla_tuple %v464, %v456, %v16
    %467 = xla_tuple %466
    %v468 = vsel %vm463, %v456, %v16
    %469 = xla_tuple %v468
    %s470 = scalar_lea.vmem [#allocation17], 136
    %472 = vst [vmem:[%s470] sm:$0xff] %v468
    %s473 = scalar_lea.vmem %s2, 144
    %v474 = vld [vmem:[%s473] sm:$0xff]
    %v475 = vlaneseq
    %v476 = vshrl.u32 %v475, 7
    %v477 = vadd.s32 %v476, 32
    %vm478 = vcmp.lt.s32.totalorder %v477, 36
    %v479 = vsel %vm478, %v474, %v15
    %v480 = vlaneseq
    %v481 = vshrl.u32 %v480, 7
    %v483 = vadd.s32 %v481, 32
    %484 = xla_tuple %v483, %v17
    %485 = xla_tuple %484
    %vm486 = vcmp.lt.s32.totalorder %v483, %v17
    %v487 = vsel %vm486, 1, 0
    %488 = xla_tuple %v487
    %489 = xla_tuple %v487, %v479, %v16
    %490 = xla_tuple %489
    %v491 = vsel %vm486, %v479, %v16
    %492 = xla_tuple %v491
    %s493 = scalar_lea.vmem [#allocation17], 144
    %495 = vst [vmem:[%s493] sm:$0xff] %v491
    %s496 = scalar_lea.vmem %s2, 152
    %v497 = vld [vmem:[%s496] sm:$0xff]
    %v498 = vlaneseq
    %v499 = vshrl.u32 %v498, 7
    %v500 = vadd.s32 %v499, 32
    %vm501 = vcmp.lt.s32.totalorder %v500, 36
    %v502 = vsel %vm501, %v497, %v15
    %v503 = vlaneseq
    %v504 = vshrl.u32 %v503, 7
    %v506 = vadd.s32 %v504, 32
    %507 = xla_tuple %v506, %v17
    %508 = xla_tuple %507
    %vm509 = vcmp.lt.s32.totalorder %v506, %v17
    %v510 = vsel %vm509, 1, 0
    %511 = xla_tuple %v510
    %512 = xla_tuple %v510, %v502, %v16
    %513 = xla_tuple %512
    %v514 = vsel %vm509, %v502, %v16
    %515 = xla_tuple %v514
    %s516 = scalar_lea.vmem [#allocation17], 152
    %518 = vst [vmem:[%s516] sm:$0xff] %v514
    %s519 = ssub.s32 0, 0
    %p520 = scmp.lt.s32.totalorder %s519, 0
    %s521 = scalar_select %p520, 0, 255
    %v522 = vld [vmem:[%s57] sm:%s521]
    %v523 = vlaneseq
    %v524 = vand.u32 %v523, 127
    %v525 = vadd.s32 %v524, 128
    %vm526 = vcmp.lt.s32.totalorder %v525, 129
    %v527 = vsel %vm526, %v522, %v18
    %v528 = vlaneseq
    %v529 = vand.u32 %v528, 127
    %vm530 = vcmp.lt.s32.totalorder %v529, 92
    %v531 = vsel %vm530, %v527, %v18
    %532 = vrot.lane.b32.xlu0 %v531, 36
    %v533 = vpop.permute.xlu0 %532
    %v534 = vld [vmem:[%s8] sm:$0xff]
    %v535 = vlaneseq
    %v536 = vand.u32 %v535, 127
    %vm538 = vcmp.lt.s32.totalorder %v536, 36
    %v539 = vsel %vm538, %v534, %v19
    %v540 = vlaneseq
    %v541 = vand.u32 %v540, 127
    %544 = xla_tuple %v541, %v21
    %545 = xla_tuple %544
    %vm546 = vcmp.lt.s32.totalorder %v541, %v21
    %v547 = vsel %vm546, 1, 0
    %548 = xla_tuple %v547
    %549 = xla_tuple %v547, %v539, %v20
    %550 = xla_tuple %549
    %v551 = vsel %vm546, %v539, %v20
    %552 = xla_tuple %v551
    %553 = xla_tuple %v547, %v533, %v20
    %554 = xla_tuple %553
    %v555 = vsel %vm546, %v533, %v20
    %556 = xla_tuple %v555
    %557 = xla_tuple %v551, %v555
    %558 = xla_tuple %557
    %v559 = vmax.f32 %v551, %v555
    %560 = xla_tuple %v559
    %562 = vst [vmem:[#allocation18] sm:$0xff] %v559
    %s563 = scalar_lea.vmem %s57, 8
    %s564 = ssub.s32 0, 0
    %p565 = scmp.lt.s32.totalorder %s564, 0
    %s566 = scalar_select %p565, 0, 255
    %v567 = vld [vmem:[%s563] sm:%s566]
    %s568 = scalar_lea.vmem %s57, 8
    %v569 = vlaneseq
    %v570 = vand.u32 %v569, 127
    %v571 = vadd.s32 %v570, 128
    %vm572 = vcmp.lt.s32.totalorder %v571, 129
    %v573 = vsel %vm572, %v567, %v18
    %v574 = vlaneseq
    %v575 = vand.u32 %v574, 127
    %vm576 = vcmp.lt.s32.totalorder %v575, 92
    %v577 = vsel %vm576, %v573, %v18
    %578 = vrot.lane.b32.xlu0 %v577, 36
    %v579 = vpop.permute.xlu0 %578
    %s580 = scalar_lea.vmem %s8, 8
    %v581 = vld [vmem:[%s580] sm:$0xff]
    %v582 = vlaneseq
    %v583 = vand.u32 %v582, 127
    %vm585 = vcmp.lt.s32.totalorder %v583, 36
    %v586 = vsel %vm585, %v581, %v19
    %v587 = vlaneseq
    %v588 = vand.u32 %v587, 127
    %591 = xla_tuple %v588, %v21
    %592 = xla_tuple %591
    %vm593 = vcmp.lt.s32.totalorder %v588, %v21
    %v594 = vsel %vm593, 1, 0
    %595 = xla_tuple %v594
    %596 = xla_tuple %v594, %v586, %v20
    %597 = xla_tuple %596
    %v598 = vsel %vm593, %v586, %v20
    %599 = xla_tuple %v598
    %600 = xla_tuple %v594, %v579, %v20
    %601 = xla_tuple %600
    %v602 = vsel %vm593, %v579, %v20
    %603 = xla_tuple %v602
    %604 = xla_tuple %v598, %v602
    %605 = xla_tuple %604
    %v606 = vmax.f32 %v598, %v602
    %607 = xla_tuple %v606
    %s608 = scalar_lea.vmem [#allocation18], 8
    %610 = vst [vmem:[%s608] sm:$0xff] %v606
    %s611 = scalar_lea.vmem %s57, 16
    %s612 = ssub.s32 0, 0
    %p613 = scmp.lt.s32.totalorder %s612, 0
    %s614 = scalar_select %p613, 0, 255
    %v615 = vld [vmem:[%s611] sm:%s614]
    %s616 = scalar_lea.vmem %s57, 16
    %v617 = vlaneseq
    %v618 = vand.u32 %v617, 127
    %v619 = vadd.s32 %v618, 128
    %vm620 = vcmp.lt.s32.totalorder %v619, 129
    %v621 = vsel %vm620, %v615, %v18
    %v622 = vlaneseq
    %v623 = vand.u32 %v622, 127
    %vm624 = vcmp.lt.s32.totalorder %v623, 92
    %v625 = vsel %vm624, %v621, %v18
    %626 = vrot.lane.b32.xlu0 %v625, 36
    %v627 = vpop.permute.xlu0 %626
    %s628 = scalar_lea.vmem %s8, 16
    %v629 = vld [vmem:[%s628] sm:$0xff]
    %v630 = vlaneseq
    %v631 = vand.u32 %v630, 127
    %vm633 = vcmp.lt.s32.totalorder %v631, 36
    %v634 = vsel %vm633, %v629, %v19
    %v635 = vlaneseq
    %v636 = vand.u32 %v635, 127
    %639 = xla_tuple %v636, %v21
    %640 = xla_tuple %639
    %vm641 = vcmp.lt.s32.totalorder %v636, %v21
    %v642 = vsel %vm641, 1, 0
    %643 = xla_tuple %v642
    %644 = xla_tuple %v642, %v634, %v20
    %645 = xla_tuple %644
    %v646 = vsel %vm641, %v634, %v20
    %647 = xla_tuple %v646
    %648 = xla_tuple %v642, %v627, %v20
    %649 = xla_tuple %648
    %v650 = vsel %vm641, %v627, %v20
    %651 = xla_tuple %v650
    %652 = xla_tuple %v646, %v650
    %653 = xla_tuple %652
    %v654 = vmax.f32 %v646, %v650
    %655 = xla_tuple %v654
    %s656 = scalar_lea.vmem [#allocation18], 16
    %658 = vst [vmem:[%s656] sm:$0xff] %v654
    %s659 = scalar_lea.vmem %s57, 24
    %s660 = ssub.s32 0, 0
    %p661 = scmp.lt.s32.totalorder %s660, 0
    %s662 = scalar_select %p661, 0, 255
    %v663 = vld [vmem:[%s659] sm:%s662]
    %s664 = scalar_lea.vmem %s57, 24
    %v665 = vlaneseq
    %v666 = vand.u32 %v665, 127
    %v667 = vadd.s32 %v666, 128
    %vm668 = vcmp.lt.s32.totalorder %v667, 129
    %v669 = vsel %vm668, %v663, %v18
    %v670 = vlaneseq
    %v671 = vand.u32 %v670, 127
    %vm672 = vcmp.lt.s32.totalorder %v671, 92
    %v673 = vsel %vm672, %v669, %v18
    %674 = vrot.lane.b32.xlu0 %v673, 36
    %v675 = vpop.permute.xlu0 %674
    %s676 = scalar_lea.vmem %s8, 24
    %v677 = vld [vmem:[%s676] sm:$0xff]
    %v678 = vlaneseq
    %v679 = vand.u32 %v678, 127
    %vm681 = vcmp.lt.s32.totalorder %v679, 36
    %v682 = vsel %vm681, %v677, %v19
    %v683 = vlaneseq
    %v684 = vand.u32 %v683, 127
    %687 = xla_tuple %v684, %v21
    %688 = xla_tuple %687
    %vm689 = vcmp.lt.s32.totalorder %v684, %v21
    %v690 = vsel %vm689, 1, 0
    %691 = xla_tuple %v690
    %692 = xla_tuple %v690, %v682, %v20
    %693 = xla_tuple %692
    %v694 = vsel %vm689, %v682, %v20
    %695 = xla_tuple %v694
    %696 = xla_tuple %v690, %v675, %v20
    %697 = xla_tuple %696
    %v698 = vsel %vm689, %v675, %v20
    %699 = xla_tuple %v698
    %700 = xla_tuple %v694, %v698
    %701 = xla_tuple %700
    %v702 = vmax.f32 %v694, %v698
    %703 = xla_tuple %v702
    %s704 = scalar_lea.vmem [#allocation18], 24
    %706 = vst [vmem:[%s704] sm:$0xff] %v702
    %v707 = vld [vmem:[%s9] sm:$0xff]
    %709 = vst [vmem:[#allocation19] sm:$0xff] %v707
    %v710 = vld [vmem:[#allocation18] sm:$0xff]
    %v711 = vld [vmem:[#allocation18 + $0x8] sm:$0xff]
    %v712 = vld [vmem:[#allocation18 + $0x10] sm:$0xff]
    %v713 = vld [vmem:[#allocation18 + $0x18] sm:$0xff]
    %v714 = vld [vmem:[#allocation17] sm:$0xff]
    %v715 = vld [vmem:[#allocation17 + $0x8] sm:$0xff]
    %v716 = vld [vmem:[#allocation17 + $0x10] sm:$0xff]
    %v717 = vld [vmem:[#allocation17 + $0x18] sm:$0xff]
    %v718 = vld [vmem:[#allocation17 + $0x20] sm:$0xff]
    %v719 = vld [vmem:[#allocation17 + $0x28] sm:$0xff]
    %v720 = vld [vmem:[#allocation17 + $0x30] sm:$0xff]
    %v721 = vld [vmem:[#allocation17 + $0x38] sm:$0xff]
    %v722 = vld [vmem:[#allocation17 + $0x40] sm:$0xff]
    %v723 = vld [vmem:[#allocation17 + $0x48] sm:$0xff]
    %v724 = vld [vmem:[#allocation17 + $0x50] sm:$0xff]
    %v725 = vld [vmem:[#allocation17 + $0x58] sm:$0xff]
    %v726 = vld [vmem:[#allocation17 + $0x60] sm:$0xff]
    %v727 = vld [vmem:[#allocation17 + $0x68] sm:$0xff]
    %v728 = vld [vmem:[#allocation17 + $0x70] sm:$0xff]
    %v729 = vld [vmem:[#allocation17 + $0x78] sm:$0xff]
    %v730 = vld [vmem:[#allocation17 + $0x80] sm:$0xff]
    %v731 = vld [vmem:[#allocation17 + $0x88] sm:$0xff]
    %v732 = vld [vmem:[#allocation17 + $0x90] sm:$0xff]
    %v733 = vld [vmem:[#allocation17 + $0x98] sm:$0xff]
    %vm734 = vcmask 326656
    %v736 = vsel %vm734, %v710, 0
    %v739 = vsel %vm734, %v711, 0
    %v742 = vsel %vm734, %v712, 0
    %v745 = vsel %vm734, %v713, 0
    %747 = vmatprep.subr.mxu0 %v715
    %748 = vmatpush1.msra.mxu0 %v714
    %749 = vmatprep.subr.mxu0 %v719
    %750 = vmatpush1.msra.mxu0 %v718
    %751 = vmatprep.subr.mxu0 %v723
    %752 = vmatpush1.msra.mxu0 %v722
    %753 = vmatprep.subr.mxu0 %v727
    %754 = vmatpush1.msra.mxu0 %v726
    %755 = vmatprep.subr.mxu0 %v731
    %756 = vmatpush1.msra.mxu0 %v730
    %757 = vmatprep.subr.mxu0 0.0
    %758 = vmatpush1.msra.mxu0 0.0
    %759 = vmatprep.subr.mxu0 0.0
    %760 = vmatpush1.msra.mxu0 0.0
    %761 = vmatprep.subr.mxu0 0.0
    %762 = vmatpush1.msra.mxu0 0.0
    %763 = vmatprep.subr.mxu0 0.0
    %764 = vmatpush1.msra.mxu0 0.0
    %765 = vmatprep.subr.mxu0 0.0
    %766 = vmatpush1.msra.mxu0 0.0
    %767 = vmatprep.subr.mxu0 0.0
    %768 = vmatpush1.msra.mxu0 0.0
    %769 = vmatprep.subr.mxu0 0.0
    %770 = vmatpush1.msra.mxu0 0.0
    %771 = vmatprep.subr.mxu0 0.0
    %772 = vmatpush1.msra.mxu0 0.0
    %773 = vmatprep.subr.mxu0 0.0
    %774 = vmatpush1.msra.mxu0 0.0
    %775 = vmatprep.subr.mxu0 0.0
    %776 = vmatpush1.msra.mxu0 0.0
    %777 = vmatprep.subr.mxu0 0.0
    %778 = vmatpush1.msra.mxu0 0.0
    %779 = vmatprep.subr.mxu0 0.0
    %780 = vmatpush1.msra.mxu0 0.0
    %781 = vmatprep.subr.mxu0 0.0
    %782 = vmatpush1.msra.mxu0 0.0
    %783 = vmatprep.subr.mxu0 0.0
    %784 = vmatpush1.msra.mxu0 0.0
    %785 = vmatprep.subr.mxu0 0.0
    %786 = vmatpush1.msra.mxu0 0.0
    %787 = vmatprep.subr.mxu0 0.0
    %788 = vmatpush1.msra.mxu0 0.0
    %789 = vmatprep.subr.mxu0 0.0
    %790 = vmatpush1.msra.mxu0 0.0
    %791 = vmatprep.subr.mxu0 0.0
    %792 = vmatpush1.msra.mxu0 0.0
    %793 = vmatprep.subr.mxu0 0.0
    %794 = vmatpush1.msra.mxu0 0.0
    %795 = vmatprep.subr.mxu0 0.0
    %796 = vmatpush1.msra.mxu0 0.0
    %797 = vmatprep.subr.mxu0 0.0
    %798 = vmatpush1.msra.mxu0 0.0
    %799 = vmatprep.subr.mxu0 0.0
    %800 = vmatpush1.msra.mxu0 0.0
    %801 = vmatprep.subr.mxu0 0.0
    %802 = vmatpush1.msra.mxu0 0.0
    %803 = vmatprep.subr.mxu0 0.0
    %804 = vmatpush1.msra.mxu0 0.0
    %805 = vmatprep.subr.mxu0 0.0
    %806 = vmatpush1.msra.mxu0 0.0
    %807 = vmatprep.subr.mxu0 0.0
    %808 = vmatpush1.msra.mxu0 0.0
    %809 = vmatprep.subr.mxu0 0.0
    %810 = vmatpush1.msra.mxu0 0.0
    %811 = vmatprep.mubr.f32.mxu0 0.0
    %812 = vmatmul.mubr.f32.gmra.mrb[0].mxu0 %v736
    %v813 = vpop.f32.mrb[0].mxu0
    %v814 = vadd.f32 0.0, %v813
    %v815 = vpop.f32.mrb[0].mxu0
    %v816 = vadd.f32 0.0, %v815
    %817 = vmatprep.mubr.f32.mxu0 0.0
    %818 = vmatmul.mubr.f32.gmra.mrb[0].mxu0 %v739
    %v819 = vpop.f32.mrb[0].mxu0
    %v820 = vadd.f32 0.0, %v819
    %v821 = vpop.f32.mrb[0].mxu0
    %v822 = vadd.f32 0.0, %v821
    %823 = vmatprep.mubr.f32.mxu0 0.0
    %824 = vmatmul.mubr.f32.gmra.mrb[0].mxu0 %v742
    %v825 = vpop.f32.mrb[0].mxu0
    %v826 = vadd.f32 0.0, %v825
    %v827 = vpop.f32.mrb[0].mxu0
    %v828 = vadd.f32 0.0, %v827
    %829 = vmatprep.mubr.f32.mxu0 0.0
    %830 = vmatmul.mubr.f32.gmra.mrb[0].mxu0 %v745
    %v831 = vpop.f32.mrb[0].mxu0
    %v832 = vadd.f32 0.0, %v831
    %v833 = vpop.f32.mrb[0].mxu0
    %v834 = vadd.f32 0.0, %v833
    %835 = vdwg.mxu0
    %836 = vmatprep.subr.mxu0 %v717
    %837 = vmatpush1.msra.mxu0 %v716
    %838 = vmatprep.subr.mxu0 %v721
    %839 = vmatpush1.msra.mxu0 %v720
    %840 = vmatprep.subr.mxu0 %v725
    %841 = vmatpush1.msra.mxu0 %v724
    %842 = vmatprep.subr.mxu0 %v729
    %843 = vmatpush1.msra.mxu0 %v728
    %844 = vmatprep.subr.mxu0 %v733
    %845 = vmatpush1.msra.mxu0 %v732
    %846 = vmatprep.subr.mxu0 0.0
    %847 = vmatpush1.msra.mxu0 0.0
    %848 = vmatprep.subr.mxu0 0.0
    %849 = vmatpush1.msra.mxu0 0.0
    %850 = vmatprep.subr.mxu0 0.0
    %851 = vmatpush1.msra.mxu0 0.0
    %852 = vmatprep.subr.mxu0 0.0
    %853 = vmatpush1.msra.mxu0 0.0
    %854 = vmatprep.subr.mxu0 0.0
    %855 = vmatpush1.msra.mxu0 0.0
    %856 = vmatprep.subr.mxu0 0.0
    %857 = vmatpush1.msra.mxu0 0.0
    %858 = vmatprep.subr.mxu0 0.0
    %859 = vmatpush1.msra.mxu0 0.0
    %860 = vmatprep.subr.mxu0 0.0
    %861 = vmatpush1.msra.mxu0 0.0
    %862 = vmatprep.subr.mxu0 0.0
    %863 = vmatpush1.msra.mxu0 0.0
    %864 = vmatprep.subr.mxu0 0.0
    %865 = vmatpush1.msra.mxu0 0.0
    %866 = vmatprep.subr.mxu0 0.0
    %867 = vmatpush1.msra.mxu0 0.0
    %868 = vmatprep.subr.mxu0 0.0
    %869 = vmatpush1.msra.mxu0 0.0
    %870 = vmatprep.subr.mxu0 0.0
    %871 = vmatpush1.msra.mxu0 0.0
    %872 = vmatprep.subr.mxu0 0.0
    %873 = vmatpush1.msra.mxu0 0.0
    %874 = vmatprep.subr.mxu0 0.0
    %875 = vmatpush1.msra.mxu0 0.0
    %876 = vmatprep.subr.mxu0 0.0
    %877 = vmatpush1.msra.mxu0 0.0
    %878 = vmatprep.subr.mxu0 0.0
    %879 = vmatpush1.msra.mxu0 0.0
    %880 = vmatprep.subr.mxu0 0.0
    %881 = vmatpush1.msra.mxu0 0.0
    %882 = vmatprep.subr.mxu0 0.0
    %883 = vmatpush1.msra.mxu0 0.0
    %884 = vmatprep.subr.mxu0 0.0
    %885 = vmatpush1.msra.mxu0 0.0
    %886 = vmatprep.subr.mxu0 0.0
    %887 = vmatpush1.msra.mxu0 0.0
    %888 = vmatprep.subr.mxu0 0.0
    %889 = vmatpush1.msra.mxu0 0.0
    %890 = vmatprep.subr.mxu0 0.0
    %891 = vmatpush1.msra.mxu0 0.0
    %892 = vmatprep.subr.mxu0 0.0
    %893 = vmatpush1.msra.mxu0 0.0
    %894 = vmatprep.subr.mxu0 0.0
    %895 = vmatpush1.msra.mxu0 0.0
    %896 = vmatprep.subr.mxu0 0.0
    %897 = vmatpush1.msra.mxu0 0.0
    %898 = vmatprep.subr.mxu0 0.0
    %899 = vmatpush1.msra.mxu0 0.0
    %900 = vmatprep.mubr.f32.mxu0 0.0
    %901 = vmatmul.mubr.f32.gmra.mrb[0].mxu0 %v736
    %v902 = vpop.f32.mrb[0].mxu0
    %v903 = vadd.f32 0.0, %v902
    %v904 = vpop.f32.mrb[0].mxu0
    %v905 = vadd.f32 0.0, %v904
    %906 = vmatprep.mubr.f32.mxu0 0.0
    %907 = vmatmul.mubr.f32.gmra.mrb[0].mxu0 %v739
    %v908 = vpop.f32.mrb[0].mxu0
    %v909 = vadd.f32 0.0, %v908
    %v910 = vpop.f32.mrb[0].mxu0
    %v911 = vadd.f32 0.0, %v910
    %912 = vmatprep.mubr.f32.mxu0 0.0
    %913 = vmatmul.mubr.f32.gmra.mrb[0].mxu0 %v742
    %v914 = vpop.f32.mrb[0].mxu0
    %v915 = vadd.f32 0.0, %v914
    %v916 = vpop.f32.mrb[0].mxu0
    %v917 = vadd.f32 0.0, %v916
    %918 = vmatprep.mubr.f32.mxu0 0.0
    %919 = vmatmul.mubr.f32.gmra.mrb[0].mxu0 %v745
    %v920 = vpop.f32.mrb[0].mxu0
    %v921 = vadd.f32 0.0, %v920
    %v922 = vpop.f32.mrb[0].mxu0
    %v923 = vadd.f32 0.0, %v922
    %924 = vdwg.mxu0
    %v925 = vmax.f32 %v814, 0.0
    %v926 = vmax.f32 %v816, 0.0
    %v927 = vmax.f32 %v903, 0.0
    %v928 = vmax.f32 %v905, 0.0
    %v929 = vmax.f32 %v820, 0.0
    %v930 = vmax.f32 %v822, 0.0
    %v931 = vmax.f32 %v909, 0.0
    %v932 = vmax.f32 %v911, 0.0
    %v933 = vmax.f32 %v826, 0.0
    %v934 = vmax.f32 %v828, 0.0
    %v935 = vmax.f32 %v915, 0.0
    %v936 = vmax.f32 %v917, 0.0
    %v937 = vmax.f32 %v832, 0.0
    %v938 = vmax.f32 %v834, 0.0
    %v939 = vmax.f32 %v921, 0.0
    %v940 = vmax.f32 %v923, 0.0
    %v941 = vld [vmem:[%s0] sm:$0xff]
    %v942 = vld [vmem:[%s0 + $0x8] sm:$0xff]
    %v943 = vld [vmem:[%s0 + $0x10] sm:$0xff]
    %v944 = vld [vmem:[%s0 + $0x18] sm:$0xff]
    %v945 = vld [vmem:[%s0 + $0x20] sm:$0xff]
    %v946 = vld [vmem:[%s0 + $0x28] sm:$0xff]
    %v947 = vld [vmem:[%s0 + $0x30] sm:$0xff]
    %v948 = vld [vmem:[%s0 + $0x38] sm:$0xff]
    %v949 = vld [vmem:[%s0 + $0x40] sm:$0xff]
    %v950 = vld [vmem:[%s0 + $0x48] sm:$0xff]
    %v951 = vld [vmem:[%s0 + $0x50] sm:$0xff]
    %v952 = vld [vmem:[%s0 + $0x58] sm:$0xff]
    %v953 = vld [vmem:[%s0 + $0x60] sm:$0xff]
    %v954 = vld [vmem:[%s0 + $0x68] sm:$0xff]
    %v955 = vld [vmem:[%s0 + $0x70] sm:$0xff]
    %v956 = vld [vmem:[%s0 + $0x78] sm:$0xff]
    %v957 = vld [vmem:[%s0 + $0x80] sm:$0xff]
    %v958 = vld [vmem:[%s0 + $0x88] sm:$0xff]
    %v959 = vld [vmem:[%s0 + $0x90] sm:$0xff]
    %v960 = vld [vmem:[%s0 + $0x98] sm:$0xff]
    %v961 = vld [vmem:[%s0 + $0xa0] sm:$0xff]
    %v962 = vld [vmem:[%s0 + $0xa8] sm:$0xff]
    %v963 = vld [vmem:[%s0 + $0xb0] sm:$0xff]
    %v964 = vld [vmem:[%s0 + $0xb8] sm:$0xff]
    %v965 = vld [vmem:[%s0 + $0xc0] sm:$0xff]
    %v966 = vld [vmem:[%s0 + $0xc8] sm:$0xff]
    %v967 = vld [vmem:[%s0 + $0xd0] sm:$0xff]
    %v968 = vld [vmem:[%s0 + $0xd8] sm:$0xff]
    %v969 = vld [vmem:[%s0 + $0xe0] sm:$0xff]
    %v970 = vld [vmem:[%s0 + $0xe8] sm:$0xff]
    %v971 = vld [vmem:[%s0 + $0xf0] sm:$0xff]
    %v972 = vld [vmem:[%s0 + $0xf8] sm:$0xff]
    %v973 = vld [vmem:[%s0 + $0x100] sm:$0xff]
    %v974 = vld [vmem:[%s0 + $0x108] sm:$0xff]
    %v975 = vld [vmem:[%s0 + $0x110] sm:$0xff]
    %v976 = vld [vmem:[%s0 + $0x118] sm:$0xff]
    %v977 = vld [vmem:[%s0 + $0x120] sm:$0xff]
    %v978 = vld [vmem:[%s0 + $0x128] sm:$0xff]
    %v979 = vld [vmem:[%s0 + $0x130] sm:$0xff]
    %v980 = vld [vmem:[%s0 + $0x138] sm:$0xff]
    %v981 = vld [vmem:[%s0 + $0x140] sm:$0xff]
    %v982 = vld [vmem:[%s0 + $0x148] sm:$0xff]
    %v983 = vld [vmem:[%s0 + $0x150] sm:$0xff]
    %v984 = vld [vmem:[%s0 + $0x158] sm:$0xff]
    %v985 = vld [vmem:[%s0 + $0x160] sm:$0xff]
    %v986 = vld [vmem:[%s0 + $0x168] sm:$0xff]
    %v987 = vld [vmem:[%s0 + $0x170] sm:$0xff]
    %v988 = vld [vmem:[%s0 + $0x178] sm:$0xff]
    %v989 = vld [vmem:[%s0 + $0x180] sm:$0xff]
    %v990 = vld [vmem:[%s0 + $0x188] sm:$0xff]
    %v991 = vld [vmem:[%s0 + $0x190] sm:$0xff]
    %v992 = vld [vmem:[%s0 + $0x198] sm:$0xff]
    %v993 = vld [vmem:[%s0 + $0x1a0] sm:$0xff]
    %v994 = vld [vmem:[%s0 + $0x1a8] sm:$0xff]
    %v995 = vld [vmem:[%s0 + $0x1b0] sm:$0xff]
    %v996 = vld [vmem:[%s0 + $0x1b8] sm:$0xff]
    %v997 = vld [vmem:[%s0 + $0x1c0] sm:$0xff]
    %v998 = vld [vmem:[%s0 + $0x1c8] sm:$0xff]
    %v999 = vld [vmem:[%s0 + $0x1d0] sm:$0xff]
    %v1000 = vld [vmem:[%s0 + $0x1d8] sm:$0xff]
    %v1001 = vld [vmem:[%s0 + $0x1e0] sm:$0xff]
    %v1002 = vld [vmem:[%s0 + $0x1e8] sm:$0xff]
    %v1003 = vld [vmem:[%s0 + $0x1f0] sm:$0xff]
    %v1004 = vld [vmem:[%s0 + $0x1f8] sm:$0xff]
    %1005 = vmatprep.subr.mxu0 0.0
    %1006 = vmatpush1.msra.mxu0 %v941
    %1007 = vmatprep.subr.mxu0 0.0
    %1008 = vmatpush1.msra.mxu0 %v942
    %1009 = vmatprep.subr.mxu0 0.0
    %1010 = vmatpush1.msra.mxu0 %v943
    %1011 = vmatprep.subr.mxu0 0.0
    %1012 = vmatpush1.msra.mxu0 %v944
    %1013 = vmatprep.subr.mxu0 0.0
    %1014 = vmatpush1.msra.mxu0 %v945
    %1015 = vmatprep.subr.mxu0 0.0
    %1016 = vmatpush1.msra.mxu0 %v946
    %1017 = vmatprep.subr.mxu0 0.0
    %1018 = vmatpush1.msra.mxu0 %v947
    %1019 = vmatprep.subr.mxu0 0.0
    %1020 = vmatpush1.msra.mxu0 %v948
    %1021 = vmatprep.subr.mxu0 0.0
    %1022 = vmatpush1.msra.mxu0 %v949
    %1023 = vmatprep.subr.mxu0 0.0
    %1024 = vmatpush1.msra.mxu0 %v950
    %1025 = vmatprep.subr.mxu0 0.0
    %1026 = vmatpush1.msra.mxu0 %v951
    %1027 = vmatprep.subr.mxu0 0.0
    %1028 = vmatpush1.msra.mxu0 %v952
    %1029 = vmatprep.subr.mxu0 0.0
    %1030 = vmatpush1.msra.mxu0 %v953
    %1031 = vmatprep.subr.mxu0 0.0
    %1032 = vmatpush1.msra.mxu0 %v954
    %1033 = vmatprep.subr.mxu0 0.0
    %1034 = vmatpush1.msra.mxu0 %v955
    %1035 = vmatprep.subr.mxu0 0.0
    %1036 = vmatpush1.msra.mxu0 %v956
    %1037 = vmatprep.subr.mxu0 0.0
    %1038 = vmatpush1.msra.mxu0 %v957
    %1039 = vmatprep.subr.mxu0 0.0
    %1040 = vmatpush1.msra.mxu0 %v958
    %1041 = vmatprep.subr.mxu0 0.0
    %1042 = vmatpush1.msra.mxu0 %v959
    %1043 = vmatprep.subr.mxu0 0.0
    %1044 = vmatpush1.msra.mxu0 %v960
    %1045 = vmatprep.subr.mxu0 0.0
    %1046 = vmatpush1.msra.mxu0 %v961
    %1047 = vmatprep.subr.mxu0 0.0
    %1048 = vmatpush1.msra.mxu0 %v962
    %1049 = vmatprep.subr.mxu0 0.0
    %1050 = vmatpush1.msra.mxu0 %v963
    %1051 = vmatprep.subr.mxu0 0.0
    %1052 = vmatpush1.msra.mxu0 %v964
    %1053 = vmatprep.subr.mxu0 0.0
    %1054 = vmatpush1.msra.mxu0 %v965
    %1055 = vmatprep.subr.mxu0 0.0
    %1056 = vmatpush1.msra.mxu0 %v966
    %1057 = vmatprep.subr.mxu0 0.0
    %1058 = vmatpush1.msra.mxu0 %v967
    %1059 = vmatprep.subr.mxu0 0.0
    %1060 = vmatpush1.msra.mxu0 %v968
    %1061 = vmatprep.subr.mxu0 0.0
    %1062 = vmatpush1.msra.mxu0 %v969
    %1063 = vmatprep.subr.mxu0 0.0
    %1064 = vmatpush1.msra.mxu0 %v970
    %1065 = vmatprep.subr.mxu0 0.0
    %1066 = vmatpush1.msra.mxu0 %v971
    %1067 = vmatprep.subr.mxu0 0.0
    %1068 = vmatpush1.msra.mxu0 %v972
    %1069 = vmatprep.mubr.f32.mxu0 %v926
    %1070 = vmatmul.mubr.f32.gmra.mrb[0].mxu0 %v925
    %v1071 = vpop.f32.mrb[0].mxu0
    %v1072 = vadd.f32 0.0, %v1071
    %v1073 = vpop.f32.mrb[0].mxu0
    %1074 = vmatprep.mubr.f32.mxu0 %v930
    %1075 = vmatmul.mubr.f32.gmra.mrb[0].mxu0 %v929
    %v1076 = vpop.f32.mrb[0].mxu0
    %v1077 = vadd.f32 0.0, %v1076
    %v1078 = vpop.f32.mrb[0].mxu0
    %1079 = vmatprep.mubr.f32.mxu0 %v934
    %1080 = vmatmul.mubr.f32.gmra.mrb[0].mxu0 %v933
    %v1081 = vpop.f32.mrb[0].mxu0
    %v1082 = vadd.f32 0.0, %v1081
    %v1083 = vpop.f32.mrb[0].mxu0
    %1084 = vmatprep.mubr.f32.mxu0 %v938
    %1085 = vmatmul.mubr.f32.gmra.mrb[0].mxu0 %v937
    %v1086 = vpop.f32.mrb[0].mxu0
    %v1087 = vadd.f32 0.0, %v1086
    %v1088 = vpop.f32.mrb[0].mxu0
    %1089 = vdwg.mxu0
    %1090 = vmatprep.subr.mxu0 0.0
    %1091 = vmatpush1.msra.mxu0 %v973
    %1092 = vmatprep.subr.mxu0 0.0
    %1093 = vmatpush1.msra.mxu0 %v974
    %1094 = vmatprep.subr.mxu0 0.0
    %1095 = vmatpush1.msra.mxu0 %v975
    %1096 = vmatprep.subr.mxu0 0.0
    %1097 = vmatpush1.msra.mxu0 %v976
    %1098 = vmatprep.subr.mxu0 0.0
    %1099 = vmatpush1.msra.mxu0 %v977
    %1100 = vmatprep.subr.mxu0 0.0
    %1101 = vmatpush1.msra.mxu0 %v978
    %1102 = vmatprep.subr.mxu0 0.0
    %1103 = vmatpush1.msra.mxu0 %v979
    %1104 = vmatprep.subr.mxu0 0.0
    %1105 = vmatpush1.msra.mxu0 %v980
    %1106 = vmatprep.subr.mxu0 0.0
    %1107 = vmatpush1.msra.mxu0 %v981
    %1108 = vmatprep.subr.mxu0 0.0
    %1109 = vmatpush1.msra.mxu0 %v982
    %1110 = vmatprep.subr.mxu0 0.0
    %1111 = vmatpush1.msra.mxu0 %v983
    %1112 = vmatprep.subr.mxu0 0.0
    %1113 = vmatpush1.msra.mxu0 %v984
    %1114 = vmatprep.subr.mxu0 0.0
    %1115 = vmatpush1.msra.mxu0 %v985
    %1116 = vmatprep.subr.mxu0 0.0
    %1117 = vmatpush1.msra.mxu0 %v986
    %1118 = vmatprep.subr.mxu0 0.0
    %1119 = vmatpush1.msra.mxu0 %v987
    %1120 = vmatprep.subr.mxu0 0.0
    %1121 = vmatpush1.msra.mxu0 %v988
    %1122 = vmatprep.subr.mxu0 0.0
    %1123 = vmatpush1.msra.mxu0 %v989
    %1124 = vmatprep.subr.mxu0 0.0
    %1125 = vmatpush1.msra.mxu0 %v990
    %1126 = vmatprep.subr.mxu0 0.0
    %1127 = vmatpush1.msra.mxu0 %v991
    %1128 = vmatprep.subr.mxu0 0.0
    %1129 = vmatpush1.msra.mxu0 %v992
    %1130 = vmatprep.subr.mxu0 0.0
    %1131 = vmatpush1.msra.mxu0 %v993
    %1132 = vmatprep.subr.mxu0 0.0
    %1133 = vmatpush1.msra.mxu0 %v994
    %1134 = vmatprep.subr.mxu0 0.0
    %1135 = vmatpush1.msra.mxu0 %v995
    %1136 = vmatprep.subr.mxu0 0.0
    %1137 = vmatpush1.msra.mxu0 %v996
    %1138 = vmatprep.subr.mxu0 0.0
    %1139 = vmatpush1.msra.mxu0 %v997
    %1140 = vmatprep.subr.mxu0 0.0
    %1141 = vmatpush1.msra.mxu0 %v998
    %1142 = vmatprep.subr.mxu0 0.0
    %1143 = vmatpush1.msra.mxu0 %v999
    %1144 = vmatprep.subr.mxu0 0.0
    %1145 = vmatpush1.msra.mxu0 %v1000
    %1146 = vmatprep.subr.mxu0 0.0
    %1147 = vmatpush1.msra.mxu0 %v1001
    %1148 = vmatprep.subr.mxu0 0.0
    %1149 = vmatpush1.msra.mxu0 %v1002
    %1150 = vmatprep.subr.mxu0 0.0
    %1151 = vmatpush1.msra.mxu0 %v1003
    %1152 = vmatprep.subr.mxu0 0.0
    %1153 = vmatpush1.msra.mxu0 %v1004
    %1154 = vmatprep.mubr.f32.mxu0 %v928
    %1155 = vmatmul.mubr.f32.gmra.mrb[0].mxu0 %v927
    %v1156 = vpop.f32.mrb[0].mxu0
    %v1157 = vadd.f32 %v1072, %v1156
    %v1158 = vpop.f32.mrb[0].mxu0
    %1159 = vmatprep.mubr.f32.mxu0 %v932
    %1160 = vmatmul.mubr.f32.gmra.mrb[0].mxu0 %v931
    %v1161 = vpop.f32.mrb[0].mxu0
    %v1162 = vadd.f32 %v1077, %v1161
    %v1163 = vpop.f32.mrb[0].mxu0
    %1164 = vmatprep.mubr.f32.mxu0 %v936
    %1165 = vmatmul.mubr.f32.gmra.mrb[0].mxu0 %v935
    %v1166 = vpop.f32.mrb[0].mxu0
    %v1167 = vadd.f32 %v1082, %v1166
    %v1168 = vpop.f32.mrb[0].mxu0
    %1169 = vmatprep.mubr.f32.mxu0 %v940
    %1170 = vmatmul.mubr.f32.gmra.mrb[0].mxu0 %v939
    %v1171 = vpop.f32.mrb[0].mxu0
    %v1172 = vadd.f32 %v1087, %v1171
    %v1173 = vpop.f32.mrb[0].mxu0
    %1174 = vdwg.mxu0
    %v1175 = vld [vmem:[#allocation19] sm:$0xff]
    %v1176 = vld [vmem:[%s1] sm:$0xff]
    %1178 = vset.pattern.permute.xlu0 0
    %1179 = vperm.xlu0 %1178, %v1176
    %v1180 = vpop.permute.xlu0 %1179
    %vm1182 = vcmask 261120
    %v1184 = vsel %vm1182, %v1175, 0
    %1186 = vmatprep.subr.mxu0 0.0
    %1187 = vmatpush1.msra.mxu0 %v1157
    %1188 = vmatprep.subr.mxu0 0.0
    %1189 = vmatpush1.msra.mxu0 %v1162
    %1190 = vmatprep.subr.mxu0 0.0
    %1191 = vmatpush1.msra.mxu0 %v1167
    %1192 = vmatprep.subr.mxu0 0.0
    %1193 = vmatpush1.msra.mxu0 %v1172
    %1194 = vmatprep.subr.mxu0 0.0
    %1195 = vmatpush1.msra.mxu0 0.0
    %1196 = vmatprep.subr.mxu0 0.0
    %1197 = vmatpush1.msra.mxu0 0.0
    %1198 = vmatprep.subr.mxu0 0.0
    %1199 = vmatpush1.msra.mxu0 0.0
    %1200 = vmatprep.subr.mxu0 0.0
    %1201 = vmatpush1.msra.mxu0 0.0
    %1202 = vmatprep.subr.mxu0 0.0
    %1203 = vmatpush1.msra.mxu0 0.0
    %1204 = vmatprep.subr.mxu0 0.0
    %1205 = vmatpush1.msra.mxu0 0.0
    %1206 = vmatprep.subr.mxu0 0.0
    %1207 = vmatpush1.msra.mxu0 0.0
    %1208 = vmatprep.subr.mxu0 0.0
    %1209 = vmatpush1.msra.mxu0 0.0
    %1210 = vmatprep.subr.mxu0 0.0
    %1211 = vmatpush1.msra.mxu0 0.0
    %1212 = vmatprep.subr.mxu0 0.0
    %1213 = vmatpush1.msra.mxu0 0.0
    %1214 = vmatprep.subr.mxu0 0.0
    %1215 = vmatpush1.msra.mxu0 0.0
    %1216 = vmatprep.subr.mxu0 0.0
    %1217 = vmatpush1.msra.mxu0 0.0
    %1218 = vmatprep.subr.mxu0 0.0
    %1219 = vmatpush1.msra.mxu0 0.0
    %1220 = vmatprep.subr.mxu0 0.0
    %1221 = vmatpush1.msra.mxu0 0.0
    %1222 = vmatprep.subr.mxu0 0.0
    %1223 = vmatpush1.msra.mxu0 0.0
    %1224 = vmatprep.subr.mxu0 0.0
    %1225 = vmatpush1.msra.mxu0 0.0
    %1226 = vmatprep.subr.mxu0 0.0
    %1227 = vmatpush1.msra.mxu0 0.0
    %1228 = vmatprep.subr.mxu0 0.0
    %1229 = vmatpush1.msra.mxu0 0.0
    %1230 = vmatprep.subr.mxu0 0.0
    %1231 = vmatpush1.msra.mxu0 0.0
    %1232 = vmatprep.subr.mxu0 0.0
    %1233 = vmatpush1.msra.mxu0 0.0
    %1234 = vmatprep.subr.mxu0 0.0
    %1235 = vmatpush1.msra.mxu0 0.0
    %1236 = vmatprep.subr.mxu0 0.0
    %1237 = vmatpush1.msra.mxu0 0.0
    %1238 = vmatprep.subr.mxu0 0.0
    %1239 = vmatpush1.msra.mxu0 0.0
    %1240 = vmatprep.subr.mxu0 0.0
    %1241 = vmatpush1.msra.mxu0 0.0
    %1242 = vmatprep.subr.mxu0 0.0
    %1243 = vmatpush1.msra.mxu0 0.0
    %1244 = vmatprep.subr.mxu0 0.0
    %1245 = vmatpush1.msra.mxu0 0.0
    %1246 = vmatprep.subr.mxu0 0.0
    %1247 = vmatpush1.msra.mxu0 0.0
    %1248 = vmatprep.subr.mxu0 0.0
    %1249 = vmatpush1.msra.mxu0 0.0
    %1250 = vmatprep.mubr.f32.mxu0 0.0
    %1251 = vmatmul.mubr.f32.gmra.mrb[0].mxu0 %v1184
    %v1252 = vpop.f32.mrb[0].mxu0
    %v1253 = vadd.f32 %v1180, %v1252
    %v1254 = vpop.f32.mrb[0].mxu0
    %1255 = vdwg.mxu0
    %vm1256 = vcmask 15360
    %1257 = vst.msk [vmem:[%s10] sm:$0xff] %vm1256, %v1157
    %1258 = vst.msk [vmem:[%s10 + $0x8] sm:$0xff] %vm1256, %v1162
    %1259 = vst.msk [vmem:[%s10 + $0x10] sm:$0xff] %vm1256, %v1167
    %1260 = vst.msk [vmem:[%s10 + $0x18] sm:$0xff] %vm1256, %v1172
    %1261 = vst.msk [vmem:[%s10 + $0x20] sm:$0xff] %vm1256, %v1253
    // Predicated region
    $region26: #{transfer_model.2} parent=1 // pred_check
      _
    $region27: #{transfer_model.2} parent=1 // pred_check_branch
      %1263 = sbr.rel (0) target = $region29
    $region28: #{transfer_model.2} parent=1 // pred_region
      _
    $region29: #{transfer_model.2} parent=1 // pred_fallthru
      _
    // Predicated region
    $region30: #{transfer_model.2} parent=1 // pred_check
      _
    $region31: #{transfer_model.2} parent=1 // pred_check_branch
      %1265 = sbr.rel (0) target = $region33
    $region32: #{transfer_model.2} parent=1 // pred_region
      _
    $region33: #{transfer_model.2} parent=1 // pred_fallthru
      _

</llo_original>
